<compile_context>
chip_gen: v7x
topology: tpu7x:2x2x1
jax: 0.10.0
libtpu: 0.0.40
codegen_flags: <defaults>
</compile_context>

<pallas_src>
import jax
import jax.numpy as jnp
from jax import lax
from jax.experimental import pallas as pl
from jax.experimental.pallas import tpu as pltpu


# ----------------------------- kernel ---------------------------------------


def _cbam_kernel(x_ref, w1t_ref, w2t_ref, mconv_ref, bsp_ref, out_ref):
    x = x_ref[...].astype(jnp.float32)                     # (Bt, C, HW)
    bt = x.shape[0]
    wdt = w1t_ref.dtype

    # ---------------- channel attention ----------------
    avg_c = jnp.mean(x, axis=2)                            # (Bt, C)  AdaptiveAvgPool2d(1)
    max_c = jnp.max(x, axis=2)                             # (Bt, C)  AdaptiveMaxPool2d(1)
    pooled = jnp.concatenate([avg_c, max_c], axis=0)       # (2*Bt, C) shared MLP, one pass
    h = jnp.maximum(
        jnp.dot(pooled.astype(wdt), w1t_ref[...],
                preferred_element_type=jnp.float32), 0.0)  # (2*Bt, Cr)
    o = jnp.dot(h.astype(wdt), w2t_ref[...],
                preferred_element_type=jnp.float32)        # (2*Bt, C)
    ca = jax.nn.sigmoid(o[:bt] + o[bt:])                   # (Bt, C)

    # NOTE: ca has C on lanes while the broadcast below wants C on sublanes;
    # the resulting relayout is tiny at these C (secondary per review).
    scaled = x * ca[:, :, None]                            # (Bt, C, HW) = channel_att(x)*x

    # ---------------- spatial attention ----------------
    avg_s = jnp.mean(scaled, axis=1)                       # (Bt, HW)
    max_s = jnp.max(scaled, axis=1)                        # (Bt, HW)
    feat = jnp.concatenate([avg_s, max_s], axis=1)         # (Bt, 2*HW)
    # 7x7 zero-padded conv folded into a precomputed (2*HW, HW) matrix.
    conv = jnp.dot(feat.astype(mconv_ref.dtype), mconv_ref[...],
                   preferred_element_type=jnp.float32) + bsp_ref[0]
    sa = jax.nn.sigmoid(conv)                              # (Bt, HW)

    # out = spatial_att * (channel_att * x) + x, fused in one pass.
    out_ref[...] = (x + scaled * sa[:, None, :]).astype(out_ref.dtype)


# ----------------------------- host-side helpers ----------------------------


def _build_conv_matrix(wsp, H, W):
    """Fold the (2,7,7) conv weights into a (2*H*W, H*W) linear operator.

    feat_flat (Bt, 2*H*W) @ Mconv == conv2d([avg|max], wsp, padding=3) flat.
    Depends only on weights/shape, so it is built once in the wrapper
    (cache behind a weight hash if calling repeatedly with traced weights).
    """
    HW = H * W
    idx = jnp.arange(HW)
    hi, wi = idx // W, idx % W                      # input pixel  (rows of Mconv)
    hj, wj = idx // W, idx % W                      # output pixel (cols of Mconv)
    kh = hi[:, None] - hj[None, :] + 3              # (HW, HW)
    kw = wi[:, None] - wj[None, :] + 3
    valid = (kh >= 0) & (kh < 7) & (kw >= 0) & (kw < 7)
    khc = jnp.clip(kh, 0, 6)
    kwc = jnp.clip(kw, 0, 6)
    w = wsp.astype(jnp.float32)
    m_avg = jnp.where(valid, w[0][khc, kwc], 0.0)   # (HW, HW)
    m_max = jnp.where(valid, w[1][khc, kwc], 0.0)   # (HW, HW)
    return jnp.concatenate([m_avg, m_max], axis=0)  # (2*HW, HW)


def _device_budget():
    """Return (usable VMEM budget bytes, number of TensorCores per chip)."""
    kind = ""
    try:
        kind = jax.devices()[0].device_kind.lower()
    except Exception:
        pass
    two_cores = ("v7" in kind) or ("7x" in kind)
    cap = None
    try:
        cap = int(pltpu.get_tpu_info().vmem_capacity_bytes)
    except Exception:
        cap = None
    if cap is None:
        cap = (64 << 20) if two_cores else (128 << 20)
    return int(cap * 3 // 4), (2 if two_cores else 1)


def _per_batch_vmem(C, HW, itemsize):
    # 2x input + 2x output double buffers (HBM dtype) + ~3 f32-slab temporaries
    # (x copy, scaled, epilogue) per batch row.
    return C * HW * (4 * itemsize + 3 * 4)


def _choose_batch_block(B, C, HW, itemsize, *, weight_bytes, vmem_budget,
                        num_cores):
    """Pick Bt: ~4 MiB of x per step, clamped to the VMEM working-set budget.

    On dual-TensorCore chips (v7x) keep >= 2 steps per core so each core still
    software-pipelines; on single-TC chips no step-count clamp is applied.
    """
    slab = max(C * HW * itemsize, 1)
    per_batch = _per_batch_vmem(C, HW, itemsize)
    budget = max(vmem_budget - weight_bytes - (4 << 20), per_batch)
    bt = max(1, min(B, (4 << 20) // slab))          # ~4 MiB of x per grid step
    bt = max(1, min(bt, budget // per_batch))       # fit VMEM working set
    if num_cores > 1 and B >= 2 * num_cores:
        while bt > 1 and -(-B // bt) < 2 * num_cores:
            bt -= 1
    return bt


# ----------------------------- public wrapper -------------------------------


def cbam_forward(x, w1, w2, wsp, bsp, *, batch_block=None,
                 weight_dtype=jnp.bfloat16):
    B, C, H, W = x.shape
    HW = H * W
    Cr = w1.shape[0]

    x_flat = x.reshape(B, C, HW)                    # lane-dense layout (free reshape)
    mconv = _build_conv_matrix(wsp, H, W).astype(weight_dtype)   # (2*HW, HW)
    w1t = w1.astype(weight_dtype).T                 # (C, Cr)
    w2t = w2.astype(weight_dtype).T                 # (Cr, C)
    bias = bsp.astype(jnp.float32)                  # (1,) scalar, SMEM

    wbytes = weight_dtype(0).dtype.itemsize
    weight_bytes = (2 * HW * HW + 2 * C * Cr) * wbytes

    vmem_budget, num_cores = _device_budget()
    bt = batch_block if batch_block is not None else _choose_batch_block(
        B, C, HW, x.dtype.itemsize, weight_bytes=weight_bytes,
        vmem_budget=vmem_budget, num_cores=num_cores)
    bt = max(1, min(bt, B))

    # Never drop tail batches: pad B up to a multiple of bt and slice after.
    nsteps = -(-B // bt)
    Bp = nsteps * bt
    if Bp != B:
        pad = jnp.zeros((Bp - B, C, HW), x_flat.dtype)
        x_flat = jnp.concatenate([x_flat, pad], axis=0)

    vmem_limit = int(min(
        vmem_budget,
        max(32 << 20, bt * _per_batch_vmem(C, HW, x.dtype.itemsize)
            + weight_bytes + (4 << 20))))

    cost = pl.CostEstimate(
        flops=Bp * (10 * C * HW + 4 * HW * HW + 8 * C * Cr),
        transcendentals=Bp * (C + HW),
        bytes_accessed=(2 * Bp * C * HW * x.dtype.itemsize + weight_bytes),
    )

    out_flat = pl.pallas_call(
        _cbam_kernel,
        out_shape=jax.ShapeDtypeStruct((Bp, C, HW), x.dtype),
        grid=(nsteps,),
        in_specs=[
            pl.BlockSpec((bt, C, HW), lambda b: (b, 0, 0)),        # x (lane-dense)
            pl.BlockSpec((C, Cr), lambda b: (0, 0),                # MLP w1^T
                         pipeline_mode=pl.Buffered(1)),
            pl.BlockSpec((Cr, C), lambda b: (0, 0),                # MLP w2^T
                         pipeline_mode=pl.Buffered(1)),
            pl.BlockSpec((2 * HW, HW), lambda b: (0, 0),           # folded 7x7 conv
                         pipeline_mode=pl.Buffered(1)),
            pl.BlockSpec(memory_space=pltpu.MemorySpace.SMEM),     # conv bias scalar
        ],
        out_specs=pl.BlockSpec((bt, C, HW), lambda b: (b, 0, 0)),
        compiler_params=pltpu.CompilerParams(
            dimension_semantics=("parallel",),
            vmem_limit_bytes=vmem_limit),
        cost_estimate=cost,
    )(x_flat, w1t, w2t, mconv, bias)

    return out_flat[:B].reshape(B, C, H, W)


# ----------------------------- reference ------------------------------------


def cbam_reference(x, w1, w2, wsp, bsp):
    """Plain-JAX reference matching the PyTorch forward (f32 end to end)."""
    avg_c = jnp.mean(x, axis=(2, 3))
    max_c = jnp.max(x, axis=(2, 3))

    def mlp(v):
        return jnp.maximum(v @ w1.T, 0.0) @ w2.T

    ca = jax.nn.sigmoid(mlp(avg_c) + mlp(max_c))               # (B, C)
    out1 = x * ca[:, :, None, None]
    avg_s = jnp.mean(out1, axis=1, keepdims=True)
    max_s = jnp.max(out1, axis=1, keepdims=True)
    feat = jnp.concatenate([avg_s, max_s], axis=1)             # (B, 2, H, W)
    conv = lax.conv_general_dilated(
        feat, wsp[None], window_strides=(1, 1), padding=((3, 3), (3, 3)),
        dimension_numbers=("NCHW", "OIHW", "NCHW")) + bsp[0]
    sa = jax.nn.sigmoid(conv)                                  # (B, 1, H, W)
    return out1 * sa + x


# ----------------------------- test -----------------------------------------


if __name__ == "__main__":
    B, C, H, W = 2, 32, 16, 16
    ratio = 16
    Cr = C // ratio

    key = jax.random.PRNGKey(0)
    k1, k2, k3, k4, k5 = jax.random.split(key, 5)
    x = jax.random.normal(k1, (B, C, H, W), jnp.float32)
    # Deterministic synthetic params (shapes match the torch module's weights).
    w1 = 0.1 * jax.random.normal(k2, (Cr, C), jnp.float32)     # Conv2d(C, C//16, 1, bias=False)
    w2 = 0.1 * jax.random.normal(k3, (C, Cr), jnp.float32)     # Conv2d(C//16, C, 1, bias=False)
    wsp = 0.1 * jax.random.normal(k4, (2, 7, 7), jnp.float32)  # Conv2d(2, 1, 7, padding=3).weight[0]
    bsp = 0.1 * jax.random.normal(k5, (1,), jnp.float32)       # Conv2d(2, 1, 7, padding=3).bias

    ref = cbam_reference(x, w1, w2, wsp, bsp)

    # Exact-arithmetic path (f32 weights) -> tight tolerance vs. the spec.
    out_f32 = jax.block_until_ready(
        cbam_forward(x, w1, w2, wsp, bsp, weight_dtype=jnp.float32))
    assert out_f32.shape == (B, C, H, W)
    err_f32 = float(jnp.max(jnp.abs(out_f32 - ref)))
    assert jnp.allclose(out_f32, ref, atol=1e-4, rtol=1e-4), err_f32

    # Default perf path (bf16 weights, f32 MXU accumulation).
    out_bf16 = jax.block_until_ready(cbam_forward(x, w1, w2, wsp, bsp))
    err_bf16 = float(jnp.max(jnp.abs(out_bf16 - ref)))
    assert jnp.allclose(out_bf16, ref, atol=3e-2, rtol=3e-2), err_bf16

    print("KERNEL_OK")
</pallas_src>

<mosaic_0001>
module attributes {stable_mosaic.version = 11 : i64} {
  func.func @_cbam_kernel(%arg0: i32, %arg1: memref<2x32x256xf32, #tpu.memory_space<vmem>>, %arg2: memref<32x2xf32, #tpu.memory_space<vmem>>, %arg3: memref<2x32xf32, #tpu.memory_space<vmem>>, %arg4: memref<512x256xf32, #tpu.memory_space<vmem>>, %arg5: memref<1xf32, #tpu.memory_space<smem>>, %arg6: memref<2x32x256xf32, #tpu.memory_space<vmem>>) attributes {dimension_semantics = [#tpu.dimension_semantics<parallel>], iteration_bounds = array<i64: 1>, scalar_prefetch = 0 : i64, scratch_operands = 0 : i64, tpu.core_type = #tpu.core_type<tc>, window_params = [{transform_indices = @transform_0, window_bounds = array<i64: 2, 32, 256>}, {pipeline_mode = #tpu.pipeline_mode<synchronous>, transform_indices = @transform_1, window_bounds = array<i64: 32, 2>}, {pipeline_mode = #tpu.pipeline_mode<synchronous>, transform_indices = @transform_2, window_bounds = array<i64: 2, 32>}, {pipeline_mode = #tpu.pipeline_mode<synchronous>, transform_indices = @transform_3, window_bounds = array<i64: 512, 256>}, {transform_indices = @transform_4, window_bounds = array<i64: 1>}, {transform_indices = @transform_5, window_bounds = array<i64: 2, 32, 256>}]} {
    %c0 = arith.constant 0 : index
    %c0_0 = arith.constant 0 : index
    %c0_1 = arith.constant 0 : index
    %0 = vector.load %arg1[%c0, %c0_0, %c0_1] : memref<2x32x256xf32, #tpu.memory_space<vmem>>, vector<2x32x256xf32>
    %cst = arith.constant dense<0.000000e+00> : vector<2x32xf32>
    %1 = vector.multi_reduction <add>, %0, %cst [2] : vector<2x32x256xf32> to vector<2x32xf32>
    %cst_2 = arith.constant 2.560000e+02 : f32
    %2 = vector.broadcast %cst_2 : f32 to vector<2x32xf32>
    %3 = arith.divf %1, %2 : vector<2x32xf32>
    %cst_3 = arith.constant dense<0xFF800000> : vector<2x32xf32>
    %4 = vector.multi_reduction <maximumf>, %0, %cst_3 [2] : vector<2x32x256xf32> to vector<2x32xf32>
    %5 = tpu.concatenate %3, %4 in 0 : vector<2x32xf32>, vector<2x32xf32> -> vector<4x32xf32>
    %c0_4 = arith.constant 0 : index
    %c0_5 = arith.constant 0 : index
    %6 = vector.load %arg2[%c0_4, %c0_5] : memref<32x2xf32, #tpu.memory_space<vmem>>, vector<32x2xf32>
    %cst_6 = arith.constant dense<0.000000e+00> : vector<4x2xf32>
    %7 = tpu.matmul %5, %6, %cst_6 {dimension_numbers = #tpu.dot_dimension_numbers<[1], [0], [0], [1], [0, 0, 1, 1], [], []>} : vector<4x32xf32>, vector<32x2xf32>, vector<4x2xf32> -> vector<4x2xf32>
    %cst_7 = arith.constant 0.000000e+00 : f32
    %8 = vector.broadcast %cst_7 : f32 to vector<4x2xf32>
    %9 = arith.maximumf %7, %8 : vector<4x2xf32>
    %c0_8 = arith.constant 0 : index
    %c0_9 = arith.constant 0 : index
    %10 = vector.load %arg3[%c0_8, %c0_9] : memref<2x32xf32, #tpu.memory_space<vmem>>, vector<2x32xf32>
    %cst_10 = arith.constant dense<0.000000e+00> : vector<4x32xf32>
    %11 = tpu.matmul %9, %10, %cst_10 {dimension_numbers = #tpu.dot_dimension_numbers<[1], [0], [0], [1], [0, 0, 1, 1], [], []>} : vector<4x2xf32>, vector<2x32xf32>, vector<4x32xf32> -> vector<4x32xf32>
    %12 = vector.extract_strided_slice %11 {offsets = [0, 0], sizes = [2, 32], strides = [1, 1]} : vector<4x32xf32> to vector<2x32xf32>
    %13 = vector.extract_strided_slice %11 {offsets = [2, 0], sizes = [2, 32], strides = [1, 1]} : vector<4x32xf32> to vector<2x32xf32>
    %14 = arith.addf %12, %13 : vector<2x32xf32>
    %15 = arith.negf %14 : vector<2x32xf32>
    %16 = math.exp %15 : vector<2x32xf32>
    %cst_11 = arith.constant 1.000000e+00 : f32
    %17 = vector.broadcast %cst_11 : f32 to vector<2x32xf32>
    %18 = arith.addf %17, %16 : vector<2x32xf32>
    %19 = arith.divf %17, %18 : vector<2x32xf32>
    %20 = vector.shape_cast %19 : vector<2x32xf32> to vector<2x32x1xf32>
    %21 = vector.broadcast %20 : vector<2x32x1xf32> to vector<2x32x256xf32>
    %22 = arith.mulf %0, %21 : vector<2x32x256xf32>
    %cst_12 = arith.constant dense<0.000000e+00> : vector<2x256xf32>
    %23 = vector.multi_reduction <add>, %22, %cst_12 [1] : vector<2x32x256xf32> to vector<2x256xf32>
    %cst_13 = arith.constant 3.200000e+01 : f32
    %24 = vector.broadcast %cst_13 : f32 to vector<2x256xf32>
    %25 = arith.divf %23, %24 : vector<2x256xf32>
    %cst_14 = arith.constant dense<0xFF800000> : vector<2x256xf32>
    %26 = vector.multi_reduction <maximumf>, %22, %cst_14 [1] : vector<2x32x256xf32> to vector<2x256xf32>
    %27 = tpu.concatenate %25, %26 in 1 : vector<2x256xf32>, vector<2x256xf32> -> vector<2x512xf32>
    %c0_15 = arith.constant 0 : index
    %c0_16 = arith.constant 0 : index
    %28 = vector.load %arg4[%c0_15, %c0_16] : memref<512x256xf32, #tpu.memory_space<vmem>>, vector<512x256xf32>
    %cst_17 = arith.constant dense<0.000000e+00> : vector<2x256xf32>
    %29 = tpu.matmul %27, %28, %cst_17 {dimension_numbers = #tpu.dot_dimension_numbers<[1], [0], [0], [1], [0, 0, 1, 1], [], []>} : vector<2x512xf32>, vector<512x256xf32>, vector<2x256xf32> -> vector<2x256xf32>
    %c0_18 = arith.constant 0 : index
    %30 = memref.load %arg5[%c0_18] : memref<1xf32, #tpu.memory_space<smem>>
    %31 = vector.broadcast %30 : f32 to vector<2x256xf32>
    %32 = arith.addf %29, %31 : vector<2x256xf32>
    %33 = arith.negf %32 : vector<2x256xf32>
    %34 = math.exp %33 : vector<2x256xf32>
    %cst_19 = arith.constant 1.000000e+00 : f32
    %35 = vector.broadcast %cst_19 : f32 to vector<2x256xf32>
    %36 = arith.addf %35, %34 : vector<2x256xf32>
    %37 = arith.divf %35, %36 : vector<2x256xf32>
    %38 = vector.shape_cast %37 : vector<2x256xf32> to vector<2x1x256xf32>
    %39 = vector.broadcast %38 : vector<2x1x256xf32> to vector<2x32x256xf32>
    %40 = arith.mulf %22, %39 : vector<2x32x256xf32>
    %41 = arith.addf %0, %40 : vector<2x32x256xf32>
    %c0_20 = arith.constant 0 : index
    %c0_21 = arith.constant 0 : index
    %c0_22 = arith.constant 0 : index
    %42 = vector.load %arg6[%c0_20, %c0_21, %c0_22] : memref<2x32x256xf32, #tpu.memory_space<vmem>>, vector<2x32x256xf32>
    tpu.vector_store %arg6[%c0_20, %c0_21, %c0_22], %41 {strides = array<i32>} : memref<2x32x256xf32, #tpu.memory_space<vmem>>, vector<2x32x256xf32>,
    return
  }
  func.func @transform_0(%arg0: i32) -> (i32, i32, i32) {
    %c0_i32 = arith.constant 0 : i32
    %c0_i32_0 = arith.constant 0 : i32
    %c0_i32_1 = arith.constant 0 : i32
    return %arg0, %c0_i32, %c0_i32_0 : i32, i32, i32
  }
  func.func @transform_1(%arg0: i32) -> (i32, i32) {
    %c0_i32 = arith.constant 0 : i32
    %c0_i32_0 = arith.constant 0 : i32
    %c0_i32_1 = arith.constant 0 : i32
    return %c0_i32, %c0_i32_0 : i32, i32
  }
  func.func @transform_2(%arg0: i32) -> (i32, i32) {
    %c0_i32 = arith.constant 0 : i32
    %c0_i32_0 = arith.constant 0 : i32
    %c0_i32_1 = arith.constant 0 : i32
    return %c0_i32, %c0_i32_0 : i32, i32
  }
  func.func @transform_3(%arg0: i32) -> (i32, i32) {
    %c0_i32 = arith.constant 0 : i32
    %c0_i32_0 = arith.constant 0 : i32
    %c0_i32_1 = arith.constant 0 : i32
    return %c0_i32, %c0_i32_0 : i32, i32
  }
  func.func @transform_4(%arg0: i32) -> i32 {
    %c0_i32 = arith.constant 0 : i32
    %c0_i32_0 = arith.constant 0 : i32
    return %c0_i32 : i32
  }
  func.func @transform_5(%arg0: i32) -> (i32, i32, i32) {
    %c0_i32 = arith.constant 0 : i32
    %c0_i32_0 = arith.constant 0 : i32
    %c0_i32_1 = arith.constant 0 : i32
    return %arg0, %c0_i32, %c0_i32_0 : i32, i32, i32
  }
}

</mosaic_0001>

<llo_original>
// kernel: tpu_custom_call.1
$region0: #{tpu_custom_call.1}
  #allocation0 [shape = 'u32[]', space=smem, size = 0x4, offset = 0x4, fixed_abs, tag = 'smem constant byte address 0x4 - core index']
  #allocation1 [shape = 'u32[144,128]{1,0:T(1,128)}', space=vmem, size = 0x12000, scoped, tag = 'internal scratch']
  #allocation2 [shape = 'f32[1]{0:T(128)S(6)}', space=smem, size = 0x200, scoped, tag = 'scoped memory for tpu_custom_call.1']
  %s0 = inlined_call_operand.hbm [shape: f32[2,32,256], index: 0, kind: input, shape index: {}]
  %s1 = inlined_call_operand.vmem [shape: f32[32,2], index: 1, kind: input, shape index: {}]
  %s2 = inlined_call_operand.vmem [shape: f32[2,32], index: 2, kind: input, shape index: {}]
  %s3 = inlined_call_operand.hbm [shape: f32[512,256], index: 3, kind: input, shape index: {}]
  %s4 = inlined_call_operand.<no memory space> [shape: f32[1], index: 4, kind: input, shape index: {}]
  %s5 = inlined_call_operand.hbm [shape: f32[2,32,256], index: 5, kind: output, shape index: {}]
  %s6 = sld [smem:[#allocation0]]
  $region38: #{tpu_custom_call.1} parent=0
    _
  %s8 = ssub.s32 1, %s6
  %s9 = scalar_select 0, %s8, %s6
  %10 = sst [smem:[#allocation2]] %s4
  $region1: #{tpu_custom_call.1} parent=0
    #allocation3 [shape = 'u8[65536]{0}', space=vmem, size = 0x10000, scoped, tag = 'input window, operand 0, single buffered']
    #allocation4 [shape = 's32[1]{0}', space=sflag, size = 0x4, scoped, tag = 'scoped memory for tpu_custom_call.1']
    #allocation5 [shape = 's32[1]{0}', space=sflag, size = 0x4, scoped, tag = 'scoped memory for tpu_custom_call.1']
    #allocation6 [shape = 'u8[524288]{0}', space=vmem, size = 0x80000, scoped, tag = 'input window, operand 3, single buffered']
    #allocation7 [shape = 's32[1]{0}', space=sflag, size = 0x4, scoped, tag = 'scoped memory for tpu_custom_call.1']
    #allocation8 [shape = 'u8[65536]{0}', space=vmem, size = 0x10000, scoped, tag = 'output window, operand 0, single buffered']
    %11 = vsyncpa [#allocation4], 0
    %12 = vsyncpa [#allocation7], 0
    %13 = vsyncpa [#allocation5], 0
    // Predicated region
    $region2: #{tpu_custom_call.1} parent=1 // pred_check
      _
    $region3: #{tpu_custom_call.1} parent=1 // pred_check_branch
      %15 = sbr.rel (0) target = $region5
    $region4: #{tpu_custom_call.1} parent=1 // pred_region
      %s17 = ssub.s32 2048, 2048
      %18 = vsyncadd [#allocation4], %s17
      %s19 = sshll.u32 [#allocation3], 4
      %s20 = int_to_ptr.vmem [resolvable:$true] %s19
      %25 = dma.hbm_to_vmem [thread:$0]  %s0, 2048, %s20, [#allocation4], 256, 256, 16
    $region5: #{tpu_custom_call.1} parent=1 // pred_fallthru
      _
    // Predicated region
    $region6: #{tpu_custom_call.1} parent=1 // pred_check
      _
    $region7: #{tpu_custom_call.1} parent=1 // pred_check_branch
      %27 = sbr.rel (0) target = $region9
    $region8: #{tpu_custom_call.1} parent=1 // pred_region
      _
    $region9: #{tpu_custom_call.1} parent=1 // pred_fallthru
      _
    // Predicated region
    $region10: #{tpu_custom_call.1} parent=1 // pred_check
      _
    $region11: #{tpu_custom_call.1} parent=1 // pred_check_branch
      %29 = sbr.rel (0) target = $region13
    $region12: #{tpu_custom_call.1} parent=1 // pred_region
      _
    $region13: #{tpu_custom_call.1} parent=1 // pred_fallthru
      _
    // Predicated region
    $region14: #{tpu_custom_call.1} parent=1 // pred_check
      _
    $region15: #{tpu_custom_call.1} parent=1 // pred_check_branch
      %31 = sbr.rel (0) target = $region17
    $region16: #{tpu_custom_call.1} parent=1 // pred_region
      %s33 = ssub.s32 16384, 16384
      %34 = vsyncadd [#allocation7], %s33
      %s35 = sshll.u32 [#allocation6], 4
      %s36 = int_to_ptr.vmem [resolvable:$true] %s35
      %41 = dma.hbm_to_vmem [thread:$0]  %s3, 16384, %s36, [#allocation7], 256, 256, 16
    $region17: #{tpu_custom_call.1} parent=1 // pred_fallthru
      _
    // Predicated region
    $region18: #{tpu_custom_call.1} parent=1 // pred_check
      _
    $region19: #{tpu_custom_call.1} parent=1 // pred_check_branch
      %43 = sbr.rel (0) target = $region21
    $region20: #{tpu_custom_call.1} parent=1 // pred_region
      _
    $region21: #{tpu_custom_call.1} parent=1 // pred_fallthru
      _
    // Predicated region
    $region22: #{tpu_custom_call.1} parent=1 // pred_check
      _
    $region23: #{tpu_custom_call.1} parent=1 // pred_check_branch
      %45 = sbr.rel (0) target = $region25
    $region24: #{tpu_custom_call.1} parent=1 // pred_region
      %46 = dma.done [#allocation4], 2048
    $region25: #{tpu_custom_call.1} parent=1 // pred_fallthru
      _
    // Predicated region
    $region26: #{tpu_custom_call.1} parent=1 // pred_check
      _
    $region27: #{tpu_custom_call.1} parent=1 // pred_check_branch
      %48 = sbr.rel (0) target = $region29
    $region28: #{tpu_custom_call.1} parent=1 // pred_region
      %49 = dma.done [#allocation7], 16384
    $region29: #{tpu_custom_call.1} parent=1 // pred_fallthru
      _
    %v50 = vld [vmem:[#allocation3] sm:$0xff]
    %v51 = vld [vmem:[#allocation3 + $0x8] sm:$0xff]
    %v52 = vld [vmem:[#allocation3 + $0x10] sm:$0xff]
    %v53 = vld [vmem:[#allocation3 + $0x18] sm:$0xff]
    %v54 = vld [vmem:[#allocation3 + $0x20] sm:$0xff]
    %v55 = vld [vmem:[#allocation3 + $0x28] sm:$0xff]
    %v56 = vld [vmem:[#allocation3 + $0x30] sm:$0xff]
    %v57 = vld [vmem:[#allocation3 + $0x38] sm:$0xff]
    %v58 = vld [vmem:[#allocation3 + $0x40] sm:$0xff]
    %v59 = vld [vmem:[#allocation3 + $0x48] sm:$0xff]
    %v60 = vld [vmem:[#allocation3 + $0x50] sm:$0xff]
    %v61 = vld [vmem:[#allocation3 + $0x58] sm:$0xff]
    %v62 = vld [vmem:[#allocation3 + $0x60] sm:$0xff]
    %v63 = vld [vmem:[#allocation3 + $0x68] sm:$0xff]
    %v64 = vld [vmem:[#allocation3 + $0x70] sm:$0xff]
    %v65 = vld [vmem:[#allocation3 + $0x78] sm:$0xff]
    %v66 = vadd.f32 %v50, %v51
    %67 = vadd.xlane.f32.xlu0 %v66
    %v68 = vpop.xlane.xlu0 %67
    %v69 = vadd.f32 %v52, %v53
    %70 = vadd.xlane.f32.xlu0 %v69
    %v71 = vpop.xlane.xlu0 %70
    %v72 = vadd.f32 %v54, %v55
    %73 = vadd.xlane.f32.xlu0 %v72
    %v74 = vpop.xlane.xlu0 %73
    %v75 = vadd.f32 %v56, %v57
    %76 = vadd.xlane.f32.xlu0 %v75
    %v77 = vpop.xlane.xlu0 %76
    %v78 = vadd.f32 %v58, %v59
    %79 = vadd.xlane.f32.xlu0 %v78
    %v80 = vpop.xlane.xlu0 %79
    %v81 = vadd.f32 %v60, %v61
    %82 = vadd.xlane.f32.xlu0 %v81
    %v83 = vpop.xlane.xlu0 %82
    %v84 = vadd.f32 %v62, %v63
    %85 = vadd.xlane.f32.xlu0 %v84
    %v86 = vpop.xlane.xlu0 %85
    %v87 = vadd.f32 %v64, %v65
    %88 = vadd.xlane.f32.xlu0 %v87
    %v89 = vpop.xlane.xlu0 %88
    %v90 = vrcp.pop 256.0
    %v91 = vmul.f32 %v68, %v90
    %v92 = vmul.f32 %v71, %v90
    %v93 = vmul.f32 %v74, %v90
    %v94 = vmul.f32 %v77, %v90
    %v95 = vmul.f32 %v80, %v90
    %v96 = vmul.f32 %v83, %v90
    %v97 = vmul.f32 %v86, %v90
    %v98 = vmul.f32 %v89, %v90
    %v99 = vmax.f32 %v50, %v51
    %100 = vmax.xlane.f32.xlu0 %v99
    %v101 = vpop.xlane.xlu0 %100
    %v102 = vmax.f32 %v52, %v53
    %103 = vmax.xlane.f32.xlu0 %v102
    %v104 = vpop.xlane.xlu0 %103
    %v105 = vmax.f32 %v54, %v55
    %106 = vmax.xlane.f32.xlu0 %v105
    %v107 = vpop.xlane.xlu0 %106
    %v108 = vmax.f32 %v56, %v57
    %109 = vmax.xlane.f32.xlu0 %v108
    %v110 = vpop.xlane.xlu0 %109
    %v111 = vmax.f32 %v58, %v59
    %112 = vmax.xlane.f32.xlu0 %v111
    %v113 = vpop.xlane.xlu0 %112
    %v114 = vmax.f32 %v60, %v61
    %115 = vmax.xlane.f32.xlu0 %v114
    %v116 = vpop.xlane.xlu0 %115
    %v117 = vmax.f32 %v62, %v63
    %118 = vmax.xlane.f32.xlu0 %v117
    %v119 = vpop.xlane.xlu0 %118
    %v120 = vmax.f32 %v64, %v65
    %121 = vmax.xlane.f32.xlu0 %v120
    %v122 = vpop.xlane.xlu0 %121
    %v131 = vlaneseq
    %v132 = vand.u32 %v131, 127
    %v133 = vlaneseq
    %v134 = vshrl.u32 %v133, 7
    %v135 = vsub.s32 %v132, %v134
    %v136 = vrot.slane %v91, %v135
    %v137 = vadd.s32 %v132, 4294967288
    %v138 = vlaneseq
    %v139 = vshrl.u32 %v138, 7
    %v140 = vsub.s32 %v137, %v139
    %v141 = vrot.slane %v92, %v140
    %vm142 = vcmask 130112
    %v143 = vsel %vm142, %v141, %v136
    %v144 = vadd.s32 %v132, 4294967280
    %v145 = vlaneseq
    %v146 = vshrl.u32 %v145, 7
    %v147 = vsub.s32 %v144, %v146
    %v148 = vrot.slane %v93, %v147
    %vm149 = vcmask 195712
    %v150 = vsel %vm149, %v148, %v143
    %v151 = vadd.s32 %v132, 4294967272
    %v152 = vlaneseq
    %v153 = vshrl.u32 %v152, 7
    %v154 = vsub.s32 %v151, %v153
    %v155 = vrot.slane %v94, %v154
    %vm156 = vcmask 261312
    %v157 = vsel %vm156, %v155, %v150
    %v158 = vlaneseq
    %v159 = vshrl.u32 %v158, 7
    %v160 = vsub.s32 %v132, %v159
    %v161 = vrot.slane %v95, %v160
    %v162 = vlaneseq
    %v163 = vshrl.u32 %v162, 7
    %v164 = vsub.s32 %v137, %v163
    %v165 = vrot.slane %v96, %v164
    %v166 = vsel %vm142, %v165, %v161
    %v167 = vlaneseq
    %v168 = vshrl.u32 %v167, 7
    %v169 = vsub.s32 %v144, %v168
    %v170 = vrot.slane %v97, %v169
    %v171 = vsel %vm149, %v170, %v166
    %v172 = vlaneseq
    %v173 = vshrl.u32 %v172, 7
    %v174 = vsub.s32 %v151, %v173
    %v175 = vrot.slane %v98, %v174
    %v176 = vsel %vm156, %v175, %v171
    %vm177 = vcmask 1041409
    %v178 = vsel %vm177, %v176, %v157
    %v188 = vlaneseq
    %v189 = vshrl.u32 %v188, 7
    %v190 = vsub.s32 %v132, %v189
    %v191 = vrot.slane %v101, %v190
    %v192 = vlaneseq
    %v193 = vshrl.u32 %v192, 7
    %v194 = vsub.s32 %v137, %v193
    %v195 = vrot.slane %v104, %v194
    %v196 = vsel %vm142, %v195, %v191
    %v197 = vlaneseq
    %v198 = vshrl.u32 %v197, 7
    %v199 = vsub.s32 %v144, %v198
    %v200 = vrot.slane %v107, %v199
    %v201 = vsel %vm149, %v200, %v196
    %v202 = vlaneseq
    %v203 = vshrl.u32 %v202, 7
    %v204 = vsub.s32 %v151, %v203
    %v205 = vrot.slane %v110, %v204
    %v206 = vsel %vm156, %v205, %v201
    %v207 = vlaneseq
    %v208 = vshrl.u32 %v207, 7
    %v209 = vsub.s32 %v132, %v208
    %v210 = vrot.slane %v113, %v209
    %v211 = vlaneseq
    %v212 = vshrl.u32 %v211, 7
    %v213 = vsub.s32 %v137, %v212
    %v214 = vrot.slane %v116, %v213
    %v215 = vsel %vm142, %v214, %v210
    %v216 = vlaneseq
    %v217 = vshrl.u32 %v216, 7
    %v218 = vsub.s32 %v144, %v217
    %v219 = vrot.slane %v119, %v218
    %v220 = vsel %vm149, %v219, %v215
    %v221 = vlaneseq
    %v222 = vshrl.u32 %v221, 7
    %v223 = vsub.s32 %v151, %v222
    %v224 = vrot.slane %v122, %v223
    %v225 = vsel %vm156, %v224, %v220
    %vm226 = vcmask 1043459
    %v227 = vsel %vm226, %v225, %v206
    %vm229 = vcmask 1041408
    %v230 = vsel %vm229, %v178, %v227
    %v231 = vld [vmem:[%s1] sm:$0xff]
    %v232 = vld [vmem:[%s1 + $0x8] sm:$0xff]
    %v233 = vld [vmem:[%s1 + $0x10] sm:$0xff]
    %v234 = vld [vmem:[%s1 + $0x18] sm:$0xff]
    %vm235 = vcmask 261120
    %v237 = vsel %vm235, %v230, 0
    %239 = vmatprep.subr.mxu0 0.0
    %240 = vmatpush1.msra.mxu0 %v231
    %241 = vmatprep.subr.mxu0 0.0
    %242 = vmatpush1.msra.mxu0 %v232
    %243 = vmatprep.subr.mxu0 0.0
    %244 = vmatpush1.msra.mxu0 %v233
    %245 = vmatprep.subr.mxu0 0.0
    %246 = vmatpush1.msra.mxu0 %v234
    %247 = vmatprep.subr.mxu0 0.0
    %248 = vmatpush1.msra.mxu0 0.0
    %249 = vmatprep.subr.mxu0 0.0
    %250 = vmatpush1.msra.mxu0 0.0
    %251 = vmatprep.subr.mxu0 0.0
    %252 = vmatpush1.msra.mxu0 0.0
    %253 = vmatprep.subr.mxu0 0.0
    %254 = vmatpush1.msra.mxu0 0.0
    %255 = vmatprep.subr.mxu0 0.0
    %256 = vmatpush1.msra.mxu0 0.0
    %257 = vmatprep.subr.mxu0 0.0
    %258 = vmatpush1.msra.mxu0 0.0
    %259 = vmatprep.subr.mxu0 0.0
    %260 = vmatpush1.msra.mxu0 0.0
    %261 = vmatprep.subr.mxu0 0.0
    %262 = vmatpush1.msra.mxu0 0.0
    %263 = vmatprep.subr.mxu0 0.0
    %264 = vmatpush1.msra.mxu0 0.0
    %265 = vmatprep.subr.mxu0 0.0
    %266 = vmatpush1.msra.mxu0 0.0
    %267 = vmatprep.subr.mxu0 0.0
    %268 = vmatpush1.msra.mxu0 0.0
    %269 = vmatprep.subr.mxu0 0.0
    %270 = vmatpush1.msra.mxu0 0.0
    %271 = vmatprep.subr.mxu0 0.0
    %272 = vmatpush1.msra.mxu0 0.0
    %273 = vmatprep.subr.mxu0 0.0
    %274 = vmatpush1.msra.mxu0 0.0
    %275 = vmatprep.subr.mxu0 0.0
    %276 = vmatpush1.msra.mxu0 0.0
    %277 = vmatprep.subr.mxu0 0.0
    %278 = vmatpush1.msra.mxu0 0.0
    %279 = vmatprep.subr.mxu0 0.0
    %280 = vmatpush1.msra.mxu0 0.0
    %281 = vmatprep.subr.mxu0 0.0
    %282 = vmatpush1.msra.mxu0 0.0
    %283 = vmatprep.subr.mxu0 0.0
    %284 = vmatpush1.msra.mxu0 0.0
    %285 = vmatprep.subr.mxu0 0.0
    %286 = vmatpush1.msra.mxu0 0.0
    %287 = vmatprep.subr.mxu0 0.0
    %288 = vmatpush1.msra.mxu0 0.0
    %289 = vmatprep.subr.mxu0 0.0
    %290 = vmatpush1.msra.mxu0 0.0
    %291 = vmatprep.subr.mxu0 0.0
    %292 = vmatpush1.msra.mxu0 0.0
    %293 = vmatprep.subr.mxu0 0.0
    %294 = vmatpush1.msra.mxu0 0.0
    %295 = vmatprep.subr.mxu0 0.0
    %296 = vmatpush1.msra.mxu0 0.0
    %297 = vmatprep.subr.mxu0 0.0
    %298 = vmatpush1.msra.mxu0 0.0
    %299 = vmatprep.subr.mxu0 0.0
    %300 = vmatpush1.msra.mxu0 0.0
    %301 = vmatprep.subr.mxu0 0.0
    %302 = vmatpush1.msra.mxu0 0.0
    %303 = vmatprep.mubr.f32.mxu0 0.0
    %304 = vmatmul.mubr.f32.gmra.mrb[0].mxu0 %v237
    %v305 = vpop.f32.mrb[0].mxu0
    %v306 = vadd.f32 0.0, %v305
    %v307 = vpop.f32.mrb[0].mxu0
    %308 = vdwg.mxu0
    %v309 = vmax.f32 %v306, 0.0
    %v310 = vld [vmem:[%s2] sm:$0x3]
    %vm311 = vcmask 15360
    %v313 = vsel %vm311, %v309, 0
    %v316 = vsel %vm229, %v310, 0
    %318 = vmatprep.subr.mxu0 0.0
    %319 = vmatpush1.msra.mxu0 %v316
    %320 = vmatprep.subr.mxu0 0.0
    %321 = vmatpush1.msra.mxu0 0.0
    %322 = vmatprep.subr.mxu0 0.0
    %323 = vmatpush1.msra.mxu0 0.0
    %324 = vmatprep.subr.mxu0 0.0
    %325 = vmatpush1.msra.mxu0 0.0
    %326 = vmatprep.subr.mxu0 0.0
    %327 = vmatpush1.msra.mxu0 0.0
    %328 = vmatprep.subr.mxu0 0.0
    %329 = vmatpush1.msra.mxu0 0.0
    %330 = vmatprep.subr.mxu0 0.0
    %331 = vmatpush1.msra.mxu0 0.0
    %332 = vmatprep.subr.mxu0 0.0
    %333 = vmatpush1.msra.mxu0 0.0
    %334 = vmatprep.subr.mxu0 0.0
    %335 = vmatpush1.msra.mxu0 0.0
    %336 = vmatprep.subr.mxu0 0.0
    %337 = vmatpush1.msra.mxu0 0.0
    %338 = vmatprep.subr.mxu0 0.0
    %339 = vmatpush1.msra.mxu0 0.0
    %340 = vmatprep.subr.mxu0 0.0
    %341 = vmatpush1.msra.mxu0 0.0
    %342 = vmatprep.subr.mxu0 0.0
    %343 = vmatpush1.msra.mxu0 0.0
    %344 = vmatprep.subr.mxu0 0.0
    %345 = vmatpush1.msra.mxu0 0.0
    %346 = vmatprep.subr.mxu0 0.0
    %347 = vmatpush1.msra.mxu0 0.0
    %348 = vmatprep.subr.mxu0 0.0
    %349 = vmatpush1.msra.mxu0 0.0
    %350 = vmatprep.subr.mxu0 0.0
    %351 = vmatpush1.msra.mxu0 0.0
    %352 = vmatprep.subr.mxu0 0.0
    %353 = vmatpush1.msra.mxu0 0.0
    %354 = vmatprep.subr.mxu0 0.0
    %355 = vmatpush1.msra.mxu0 0.0
    %356 = vmatprep.subr.mxu0 0.0
    %357 = vmatpush1.msra.mxu0 0.0
    %358 = vmatprep.subr.mxu0 0.0
    %359 = vmatpush1.msra.mxu0 0.0
    %360 = vmatprep.subr.mxu0 0.0
    %361 = vmatpush1.msra.mxu0 0.0
    %362 = vmatprep.subr.mxu0 0.0
    %363 = vmatpush1.msra.mxu0 0.0
    %364 = vmatprep.subr.mxu0 0.0
    %365 = vmatpush1.msra.mxu0 0.0
    %366 = vmatprep.subr.mxu0 0.0
    %367 = vmatpush1.msra.mxu0 0.0
    %368 = vmatprep.subr.mxu0 0.0
    %369 = vmatpush1.msra.mxu0 0.0
    %370 = vmatprep.subr.mxu0 0.0
    %371 = vmatpush1.msra.mxu0 0.0
    %372 = vmatprep.subr.mxu0 0.0
    %373 = vmatpush1.msra.mxu0 0.0
    %374 = vmatprep.subr.mxu0 0.0
    %375 = vmatpush1.msra.mxu0 0.0
    %376 = vmatprep.subr.mxu0 0.0
    %377 = vmatpush1.msra.mxu0 0.0
    %378 = vmatprep.subr.mxu0 0.0
    %379 = vmatpush1.msra.mxu0 0.0
    %380 = vmatprep.subr.mxu0 0.0
    %381 = vmatpush1.msra.mxu0 0.0
    %382 = vmatprep.mubr.f32.mxu0 0.0
    %383 = vmatmul.mubr.f32.gmra.mrb[0].mxu0 %v313
    %v384 = vpop.f32.mrb[0].mxu0
    %v385 = vadd.f32 0.0, %v384
    %v386 = vpop.f32.mrb[0].mxu0
    %387 = vdwg.mxu0
    %v389 = vrot.slane %v385, 2
    %v391 = vadd.f32 %v385, %v389
    %v392 = vxor.u32 %v391, 2147483648
    %v393 = vmul.f32 %v392, 1.442695
    %v394 = vpow.pop %v393
    %v395 = vadd.f32 %v394, 1.0
    %v396 = vrcp.pop %v395
    %v397 = vmul.f32 1.0, %v396
    %v398 = vlaneseq
    %v399 = vshrl.u32 %v398, 7
    %v400 = vsub.s32 0, %v399
    %v401 = vrot.slane %v397, %v400
    %403 = vbcast.lane.b32.xlu0 %v401, 256
    %v404 = vpop.permute.xlu0 %403
    %s406 = sor.u32 256, 8
    %407 = vbcast.lane.b32.xlu0 %v401, %s406
    %v408 = vpop.permute.xlu0 %407
    %s410 = sor.u32 256, 16
    %411 = vbcast.lane.b32.xlu0 %v401, %s410
    %v412 = vpop.permute.xlu0 %411
    %s414 = sor.u32 256, 24
    %415 = vbcast.lane.b32.xlu0 %v401, %s414
    %v416 = vpop.permute.xlu0 %415
    %v417 = vlaneseq
    %v418 = vshrl.u32 %v417, 7
    %v419 = vsub.s32 1, %v418
    %v420 = vrot.slane %v397, %v419
    %422 = vbcast.lane.b32.xlu0 %v420, 256
    %v423 = vpop.permute.xlu0 %422
    %s425 = sor.u32 256, 8
    %426 = vbcast.lane.b32.xlu0 %v420, %s425
    %v427 = vpop.permute.xlu0 %426
    %s429 = sor.u32 256, 16
    %430 = vbcast.lane.b32.xlu0 %v420, %s429
    %v431 = vpop.permute.xlu0 %430
    %s433 = sor.u32 256, 24
    %434 = vbcast.lane.b32.xlu0 %v420, %s433
    %v435 = vpop.permute.xlu0 %434
    %v436 = vmul.f32 %v50, %v404
    %v437 = vmul.f32 %v51, %v404
    %v438 = vmul.f32 %v52, %v408
    %v439 = vmul.f32 %v53, %v408
    %v440 = vmul.f32 %v54, %v412
    %v441 = vmul.f32 %v55, %v412
    %v442 = vmul.f32 %v56, %v416
    %v443 = vmul.f32 %v57, %v416
    %v444 = vmul.f32 %v58, %v423
    %v445 = vmul.f32 %v59, %v423
    %v446 = vmul.f32 %v60, %v427
    %v447 = vmul.f32 %v61, %v427
    %v448 = vmul.f32 %v62, %v431
    %v449 = vmul.f32 %v63, %v431
    %v450 = vmul.f32 %v64, %v435
    %v451 = vmul.f32 %v65, %v435
    %v452 = vadd.f32 %v436, %v438
    %v453 = vadd.f32 %v452, %v440
    %v454 = vadd.f32 %v453, %v442
    %v455 = vrot.slane %v454, 4
    %v456 = vadd.f32 %v454, %v455
    %v457 = vrot.slane %v456, 2
    %v458 = vadd.f32 %v456, %v457
    %v459 = vrot.slane %v458, 1
    %v460 = vadd.f32 %v458, %v459
    %v461 = vadd.f32 %v437, %v439
    %v462 = vadd.f32 %v461, %v441
    %v463 = vadd.f32 %v462, %v443
    %v464 = vrot.slane %v463, 4
    %v465 = vadd.f32 %v463, %v464
    %v466 = vrot.slane %v465, 2
    %v467 = vadd.f32 %v465, %v466
    %v468 = vrot.slane %v467, 1
    %v469 = vadd.f32 %v467, %v468
    %v470 = vadd.f32 %v444, %v446
    %v471 = vadd.f32 %v470, %v448
    %v472 = vadd.f32 %v471, %v450
    %v473 = vrot.slane %v472, 4
    %v474 = vadd.f32 %v472, %v473
    %v475 = vrot.slane %v474, 2
    %v476 = vadd.f32 %v474, %v475
    %v477 = vrot.slane %v476, 1
    %v478 = vadd.f32 %v476, %v477
    %v479 = vadd.f32 %v445, %v447
    %v480 = vadd.f32 %v479, %v449
    %v481 = vadd.f32 %v480, %v451
    %v482 = vrot.slane %v481, 4
    %v483 = vadd.f32 %v481, %v482
    %v484 = vrot.slane %v483, 2
    %v485 = vadd.f32 %v483, %v484
    %v486 = vrot.slane %v485, 1
    %v487 = vadd.f32 %v485, %v486
    %v488 = vrcp.pop 32.0
    %v489 = vmul.f32 %v460, %v488
    %v490 = vmul.f32 %v469, %v488
    %v491 = vmul.f32 %v478, %v488
    %v492 = vmul.f32 %v487, %v488
    %v493 = vmax.f32 %v436, %v438
    %v494 = vmax.f32 %v493, %v440
    %v495 = vmax.f32 %v494, %v442
    %v496 = vrot.slane %v495, 4
    %v497 = vmax.f32 %v495, %v496
    %v498 = vrot.slane %v497, 2
    %v499 = vmax.f32 %v497, %v498
    %v500 = vrot.slane %v499, 1
    %v501 = vmax.f32 %v499, %v500
    %v502 = vmax.f32 %v437, %v439
    %v503 = vmax.f32 %v502, %v441
    %v504 = vmax.f32 %v503, %v443
    %v505 = vrot.slane %v504, 4
    %v506 = vmax.f32 %v504, %v505
    %v507 = vrot.slane %v506, 2
    %v508 = vmax.f32 %v506, %v507
    %v509 = vrot.slane %v508, 1
    %v510 = vmax.f32 %v508, %v509
    %v511 = vmax.f32 %v444, %v446
    %v512 = vmax.f32 %v511, %v448
    %v513 = vmax.f32 %v512, %v450
    %v514 = vrot.slane %v513, 4
    %v515 = vmax.f32 %v513, %v514
    %v516 = vrot.slane %v515, 2
    %v517 = vmax.f32 %v515, %v516
    %v518 = vrot.slane %v517, 1
    %v519 = vmax.f32 %v517, %v518
    %v520 = vmax.f32 %v445, %v447
    %v521 = vmax.f32 %v520, %v449
    %v522 = vmax.f32 %v521, %v451
    %v523 = vrot.slane %v522, 4
    %v524 = vmax.f32 %v522, %v523
    %v525 = vrot.slane %v524, 2
    %v526 = vmax.f32 %v524, %v525
    %v527 = vrot.slane %v526, 1
    %v528 = vmax.f32 %v526, %v527
    %v533 = vsel %vm177, %v491, %v489
    %v534 = vsel %vm177, %v492, %v490
    %v541 = vsel %vm177, %v519, %v501
    %v542 = vsel %vm177, %v528, %v510
    %v545 = vld [vmem:[#allocation6] sm:$0xff]
    %v546 = vld [vmem:[#allocation6 + $0x8] sm:$0xff]
    %v547 = vld [vmem:[#allocation6 + $0x10] sm:$0xff]
    %v548 = vld [vmem:[#allocation6 + $0x18] sm:$0xff]
    %v549 = vld [vmem:[#allocation6 + $0x20] sm:$0xff]
    %v550 = vld [vmem:[#allocation6 + $0x28] sm:$0xff]
    %v551 = vld [vmem:[#allocation6 + $0x30] sm:$0xff]
    %v552 = vld [vmem:[#allocation6 + $0x38] sm:$0xff]
    %v553 = vld [vmem:[#allocation6 + $0x40] sm:$0xff]
    %v554 = vld [vmem:[#allocation6 + $0x48] sm:$0xff]
    %v555 = vld [vmem:[#allocation6 + $0x50] sm:$0xff]
    %v556 = vld [vmem:[#allocation6 + $0x58] sm:$0xff]
    %v557 = vld [vmem:[#allocation6 + $0x60] sm:$0xff]
    %v558 = vld [vmem:[#allocation6 + $0x68] sm:$0xff]
    %v559 = vld [vmem:[#allocation6 + $0x70] sm:$0xff]
    %v560 = vld [vmem:[#allocation6 + $0x78] sm:$0xff]
    %v561 = vld [vmem:[#allocation6 + $0x80] sm:$0xff]
    %v562 = vld [vmem:[#allocation6 + $0x88] sm:$0xff]
    %v563 = vld [vmem:[#allocation6 + $0x90] sm:$0xff]
    %v564 = vld [vmem:[#allocation6 + $0x98] sm:$0xff]
    %v565 = vld [vmem:[#allocation6 + $0xa0] sm:$0xff]
    %v566 = vld [vmem:[#allocation6 + $0xa8] sm:$0xff]
    %v567 = vld [vmem:[#allocation6 + $0xb0] sm:$0xff]
    %v568 = vld [vmem:[#allocation6 + $0xb8] sm:$0xff]
    %v569 = vld [vmem:[#allocation6 + $0xc0] sm:$0xff]
    %v570 = vld [vmem:[#allocation6 + $0xc8] sm:$0xff]
    %v571 = vld [vmem:[#allocation6 + $0xd0] sm:$0xff]
    %v572 = vld [vmem:[#allocation6 + $0xd8] sm:$0xff]
    %v573 = vld [vmem:[#allocation6 + $0xe0] sm:$0xff]
    %v574 = vld [vmem:[#allocation6 + $0xe8] sm:$0xff]
    %v575 = vld [vmem:[#allocation6 + $0xf0] sm:$0xff]
    %v576 = vld [vmem:[#allocation6 + $0xf8] sm:$0xff]
    %v577 = vld [vmem:[#allocation6 + $0x100] sm:$0xff]
    %v578 = vld [vmem:[#allocation6 + $0x108] sm:$0xff]
    %v579 = vld [vmem:[#allocation6 + $0x110] sm:$0xff]
    %v580 = vld [vmem:[#allocation6 + $0x118] sm:$0xff]
    %v581 = vld [vmem:[#allocation6 + $0x120] sm:$0xff]
    %v582 = vld [vmem:[#allocation6 + $0x128] sm:$0xff]
    %v583 = vld [vmem:[#allocation6 + $0x130] sm:$0xff]
    %v584 = vld [vmem:[#allocation6 + $0x138] sm:$0xff]
    %v585 = vld [vmem:[#allocation6 + $0x140] sm:$0xff]
    %v586 = vld [vmem:[#allocation6 + $0x148] sm:$0xff]
    %v587 = vld [vmem:[#allocation6 + $0x150] sm:$0xff]
    %v588 = vld [vmem:[#allocation6 + $0x158] sm:$0xff]
    %v589 = vld [vmem:[#allocation6 + $0x160] sm:$0xff]
    %v590 = vld [vmem:[#allocation6 + $0x168] sm:$0xff]
    %v591 = vld [vmem:[#allocation6 + $0x170] sm:$0xff]
    %v592 = vld [vmem:[#allocation6 + $0x178] sm:$0xff]
    %v593 = vld [vmem:[#allocation6 + $0x180] sm:$0xff]
    %v594 = vld [vmem:[#allocation6 + $0x188] sm:$0xff]
    %v595 = vld [vmem:[#allocation6 + $0x190] sm:$0xff]
    %v596 = vld [vmem:[#allocation6 + $0x198] sm:$0xff]
    %v597 = vld [vmem:[#allocation6 + $0x1a0] sm:$0xff]
    %v598 = vld [vmem:[#allocation6 + $0x1a8] sm:$0xff]
    %v599 = vld [vmem:[#allocation6 + $0x1b0] sm:$0xff]
    %v600 = vld [vmem:[#allocation6 + $0x1b8] sm:$0xff]
    %v601 = vld [vmem:[#allocation6 + $0x1c0] sm:$0xff]
    %v602 = vld [vmem:[#allocation6 + $0x1c8] sm:$0xff]
    %v603 = vld [vmem:[#allocation6 + $0x1d0] sm:$0xff]
    %v604 = vld [vmem:[#allocation6 + $0x1d8] sm:$0xff]
    %v605 = vld [vmem:[#allocation6 + $0x1e0] sm:$0xff]
    %v606 = vld [vmem:[#allocation6 + $0x1e8] sm:$0xff]
    %v607 = vld [vmem:[#allocation6 + $0x1f0] sm:$0xff]
    %v608 = vld [vmem:[#allocation6 + $0x1f8] sm:$0xff]
    %v609 = vld [vmem:[#allocation6 + $0x200] sm:$0xff]
    %v610 = vld [vmem:[#allocation6 + $0x208] sm:$0xff]
    %v611 = vld [vmem:[#allocation6 + $0x210] sm:$0xff]
    %v612 = vld [vmem:[#allocation6 + $0x218] sm:$0xff]
    %v613 = vld [vmem:[#allocation6 + $0x220] sm:$0xff]
    %v614 = vld [vmem:[#allocation6 + $0x228] sm:$0xff]
    %v615 = vld [vmem:[#allocation6 + $0x230] sm:$0xff]
    %v616 = vld [vmem:[#allocation6 + $0x238] sm:$0xff]
    %v617 = vld [vmem:[#allocation6 + $0x240] sm:$0xff]
    %v618 = vld [vmem:[#allocation6 + $0x248] sm:$0xff]
    %v619 = vld [vmem:[#allocation6 + $0x250] sm:$0xff]
    %v620 = vld [vmem:[#allocation6 + $0x258] sm:$0xff]
    %v621 = vld [vmem:[#allocation6 + $0x260] sm:$0xff]
    %v622 = vld [vmem:[#allocation6 + $0x268] sm:$0xff]
    %v623 = vld [vmem:[#allocation6 + $0x270] sm:$0xff]
    %v624 = vld [vmem:[#allocation6 + $0x278] sm:$0xff]
    %v625 = vld [vmem:[#allocation6 + $0x280] sm:$0xff]
    %v626 = vld [vmem:[#allocation6 + $0x288] sm:$0xff]
    %v627 = vld [vmem:[#allocation6 + $0x290] sm:$0xff]
    %v628 = vld [vmem:[#allocation6 + $0x298] sm:$0xff]
    %v629 = vld [vmem:[#allocation6 + $0x2a0] sm:$0xff]
    %v630 = vld [vmem:[#allocation6 + $0x2a8] sm:$0xff]
    %v631 = vld [vmem:[#allocation6 + $0x2b0] sm:$0xff]
    %v632 = vld [vmem:[#allocation6 + $0x2b8] sm:$0xff]
    %v633 = vld [vmem:[#allocation6 + $0x2c0] sm:$0xff]
    %v634 = vld [vmem:[#allocation6 + $0x2c8] sm:$0xff]
    %v635 = vld [vmem:[#allocation6 + $0x2d0] sm:$0xff]
    %v636 = vld [vmem:[#allocation6 + $0x2d8] sm:$0xff]
    %v637 = vld [vmem:[#allocation6 + $0x2e0] sm:$0xff]
    %v638 = vld [vmem:[#allocation6 + $0x2e8] sm:$0xff]
    %v639 = vld [vmem:[#allocation6 + $0x2f0] sm:$0xff]
    %v640 = vld [vmem:[#allocation6 + $0x2f8] sm:$0xff]
    %v641 = vld [vmem:[#allocation6 + $0x300] sm:$0xff]
    %v642 = vld [vmem:[#allocation6 + $0x308] sm:$0xff]
    %v643 = vld [vmem:[#allocation6 + $0x310] sm:$0xff]
    %v644 = vld [vmem:[#allocation6 + $0x318] sm:$0xff]
    %v645 = vld [vmem:[#allocation6 + $0x320] sm:$0xff]
    %v646 = vld [vmem:[#allocation6 + $0x328] sm:$0xff]
    %v647 = vld [vmem:[#allocation6 + $0x330] sm:$0xff]
    %v648 = vld [vmem:[#allocation6 + $0x338] sm:$0xff]
    %v649 = vld [vmem:[#allocation6 + $0x340] sm:$0xff]
    %v650 = vld [vmem:[#allocation6 + $0x348] sm:$0xff]
    %v651 = vld [vmem:[#allocation6 + $0x350] sm:$0xff]
    %v652 = vld [vmem:[#allocation6 + $0x358] sm:$0xff]
    %v653 = vld [vmem:[#allocation6 + $0x360] sm:$0xff]
    %v654 = vld [vmem:[#allocation6 + $0x368] sm:$0xff]
    %v655 = vld [vmem:[#allocation6 + $0x370] sm:$0xff]
    %v656 = vld [vmem:[#allocation6 + $0x378] sm:$0xff]
    %v657 = vld [vmem:[#allocation6 + $0x380] sm:$0xff]
    %v658 = vld [vmem:[#allocation6 + $0x388] sm:$0xff]
    %v659 = vld [vmem:[#allocation6 + $0x390] sm:$0xff]
    %v660 = vld [vmem:[#allocation6 + $0x398] sm:$0xff]
    %v661 = vld [vmem:[#allocation6 + $0x3a0] sm:$0xff]
    %v662 = vld [vmem:[#allocation6 + $0x3a8] sm:$0xff]
    %v663 = vld [vmem:[#allocation6 + $0x3b0] sm:$0xff]
    %v664 = vld [vmem:[#allocation6 + $0x3b8] sm:$0xff]
    %v665 = vld [vmem:[#allocation6 + $0x3c0] sm:$0xff]
    %v666 = vld [vmem:[#allocation6 + $0x3c8] sm:$0xff]
    %v667 = vld [vmem:[#allocation6 + $0x3d0] sm:$0xff]
    %v668 = vld [vmem:[#allocation6 + $0x3d8] sm:$0xff]
    %v669 = vld [vmem:[#allocation6 + $0x3e0] sm:$0xff]
    %v670 = vld [vmem:[#allocation6 + $0x3e8] sm:$0xff]
    %v671 = vld [vmem:[#allocation6 + $0x3f0] sm:$0xff]
    %v672 = vld [vmem:[#allocation6 + $0x3f8] sm:$0xff]
    %s673 = sld [smem:[#allocation2]]
    %v674 = vstv %s673
    %675 = vmatprep.subr.mxu0 %v546
    %676 = vmatpush1.msra.mxu0 %v545
    %677 = vmatprep.subr.mxu0 %v548
    %678 = vmatpush1.msra.mxu0 %v547
    %679 = vmatprep.subr.mxu0 %v550
    %680 = vmatpush1.msra.mxu0 %v549
    %681 = vmatprep.subr.mxu0 %v552
    %682 = vmatpush1.msra.mxu0 %v551
    %683 = vmatprep.subr.mxu0 %v554
    %684 = vmatpush1.msra.mxu0 %v553
    %685 = vmatprep.subr.mxu0 %v556
    %686 = vmatpush1.msra.mxu0 %v555
    %687 = vmatprep.subr.mxu0 %v558
    %688 = vmatpush1.msra.mxu0 %v557
    %689 = vmatprep.subr.mxu0 %v560
    %690 = vmatpush1.msra.mxu0 %v559
    %691 = vmatprep.subr.mxu0 %v562
    %692 = vmatpush1.msra.mxu0 %v561
    %693 = vmatprep.subr.mxu0 %v564
    %694 = vmatpush1.msra.mxu0 %v563
    %695 = vmatprep.subr.mxu0 %v566
    %696 = vmatpush1.msra.mxu0 %v565
    %697 = vmatprep.subr.mxu0 %v568
    %698 = vmatpush1.msra.mxu0 %v567
    %699 = vmatprep.subr.mxu0 %v570
    %700 = vmatpush1.msra.mxu0 %v569
    %701 = vmatprep.subr.mxu0 %v572
    %702 = vmatpush1.msra.mxu0 %v571
    %703 = vmatprep.subr.mxu0 %v574
    %704 = vmatpush1.msra.mxu0 %v573
    %705 = vmatprep.subr.mxu0 %v576
    %706 = vmatpush1.msra.mxu0 %v575
    %707 = vmatprep.subr.mxu0 %v578
    %708 = vmatpush1.msra.mxu0 %v577
    %709 = vmatprep.subr.mxu0 %v580
    %710 = vmatpush1.msra.mxu0 %v579
    %711 = vmatprep.subr.mxu0 %v582
    %712 = vmatpush1.msra.mxu0 %v581
    %713 = vmatprep.subr.mxu0 %v584
    %714 = vmatpush1.msra.mxu0 %v583
    %715 = vmatprep.subr.mxu0 %v586
    %716 = vmatpush1.msra.mxu0 %v585
    %717 = vmatprep.subr.mxu0 %v588
    %718 = vmatpush1.msra.mxu0 %v587
    %719 = vmatprep.subr.mxu0 %v590
    %720 = vmatpush1.msra.mxu0 %v589
    %721 = vmatprep.subr.mxu0 %v592
    %722 = vmatpush1.msra.mxu0 %v591
    %723 = vmatprep.subr.mxu0 %v594
    %724 = vmatpush1.msra.mxu0 %v593
    %725 = vmatprep.subr.mxu0 %v596
    %726 = vmatpush1.msra.mxu0 %v595
    %727 = vmatprep.subr.mxu0 %v598
    %728 = vmatpush1.msra.mxu0 %v597
    %729 = vmatprep.subr.mxu0 %v600
    %730 = vmatpush1.msra.mxu0 %v599
    %731 = vmatprep.subr.mxu0 %v602
    %732 = vmatpush1.msra.mxu0 %v601
    %733 = vmatprep.subr.mxu0 %v604
    %734 = vmatpush1.msra.mxu0 %v603
    %735 = vmatprep.subr.mxu0 %v606
    %736 = vmatpush1.msra.mxu0 %v605
    %737 = vmatprep.subr.mxu0 %v608
    %738 = vmatpush1.msra.mxu0 %v607
    %739 = vmatprep.mubr.f32.mxu0 %v534
    %740 = vmatmul.mubr.f32.gmra.mrb[0].mxu0 %v533
    %v741 = vpop.f32.mrb[0].mxu0
    %v742 = vadd.f32 %v674, %v741
    %v743 = vpop.f32.mrb[0].mxu0
    %v744 = vadd.f32 %v674, %v743
    %745 = vdwg.mxu0
    %746 = vmatprep.subr.mxu0 %v610
    %747 = vmatpush1.msra.mxu0 %v609
    %748 = vmatprep.subr.mxu0 %v612
    %749 = vmatpush1.msra.mxu0 %v611
    %750 = vmatprep.subr.mxu0 %v614
    %751 = vmatpush1.msra.mxu0 %v613
    %752 = vmatprep.subr.mxu0 %v616
    %753 = vmatpush1.msra.mxu0 %v615
    %754 = vmatprep.subr.mxu0 %v618
    %755 = vmatpush1.msra.mxu0 %v617
    %756 = vmatprep.subr.mxu0 %v620
    %757 = vmatpush1.msra.mxu0 %v619
    %758 = vmatprep.subr.mxu0 %v622
    %759 = vmatpush1.msra.mxu0 %v621
    %760 = vmatprep.subr.mxu0 %v624
    %761 = vmatpush1.msra.mxu0 %v623
    %762 = vmatprep.subr.mxu0 %v626
    %763 = vmatpush1.msra.mxu0 %v625
    %764 = vmatprep.subr.mxu0 %v628
    %765 = vmatpush1.msra.mxu0 %v627
    %766 = vmatprep.subr.mxu0 %v630
    %767 = vmatpush1.msra.mxu0 %v629
    %768 = vmatprep.subr.mxu0 %v632
    %769 = vmatpush1.msra.mxu0 %v631
    %770 = vmatprep.subr.mxu0 %v634
    %771 = vmatpush1.msra.mxu0 %v633
    %772 = vmatprep.subr.mxu0 %v636
    %773 = vmatpush1.msra.mxu0 %v635
    %774 = vmatprep.subr.mxu0 %v638
    %775 = vmatpush1.msra.mxu0 %v637
    %776 = vmatprep.subr.mxu0 %v640
    %777 = vmatpush1.msra.mxu0 %v639
    %778 = vmatprep.subr.mxu0 %v642
    %779 = vmatpush1.msra.mxu0 %v641
    %780 = vmatprep.subr.mxu0 %v644
    %781 = vmatpush1.msra.mxu0 %v643
    %782 = vmatprep.subr.mxu0 %v646
    %783 = vmatpush1.msra.mxu0 %v645
    %784 = vmatprep.subr.mxu0 %v648
    %785 = vmatpush1.msra.mxu0 %v647
    %786 = vmatprep.subr.mxu0 %v650
    %787 = vmatpush1.msra.mxu0 %v649
    %788 = vmatprep.subr.mxu0 %v652
    %789 = vmatpush1.msra.mxu0 %v651
    %790 = vmatprep.subr.mxu0 %v654
    %791 = vmatpush1.msra.mxu0 %v653
    %792 = vmatprep.subr.mxu0 %v656
    %793 = vmatpush1.msra.mxu0 %v655
    %794 = vmatprep.subr.mxu0 %v658
    %795 = vmatpush1.msra.mxu0 %v657
    %796 = vmatprep.subr.mxu0 %v660
    %797 = vmatpush1.msra.mxu0 %v659
    %798 = vmatprep.subr.mxu0 %v662
    %799 = vmatpush1.msra.mxu0 %v661
    %800 = vmatprep.subr.mxu0 %v664
    %801 = vmatpush1.msra.mxu0 %v663
    %802 = vmatprep.subr.mxu0 %v666
    %803 = vmatpush1.msra.mxu0 %v665
    %804 = vmatprep.subr.mxu0 %v668
    %805 = vmatpush1.msra.mxu0 %v667
    %806 = vmatprep.subr.mxu0 %v670
    %807 = vmatpush1.msra.mxu0 %v669
    %808 = vmatprep.subr.mxu0 %v672
    %809 = vmatpush1.msra.mxu0 %v671
    %810 = vmatprep.mubr.f32.mxu0 %v542
    %811 = vmatmul.mubr.f32.gmra.mrb[0].mxu0 %v541
    %v812 = vpop.f32.mrb[0].mxu0
    %v813 = vadd.f32 %v742, %v812
    %v814 = vpop.f32.mrb[0].mxu0
    %v815 = vadd.f32 %v744, %v814
    %816 = vdwg.mxu0
    %v817 = vxor.u32 %v813, 2147483648
    %v818 = vxor.u32 %v815, 2147483648
    %v819 = vmul.f32 %v817, 1.442695
    %v820 = vpow.pop %v819
    %v821 = vmul.f32 %v818, 1.442695
    %v822 = vpow.pop %v821
    %v823 = vadd.f32 %v820, 1.0
    %v824 = vadd.f32 %v822, 1.0
    %v825 = vrcp.pop %v823
    %v826 = vmul.f32 1.0, %v825
    %v827 = vrcp.pop %v824
    %v828 = vmul.f32 1.0, %v827
    %v831 = vcombine.low %v826, %v828
    %v833 = vunpack.c.l.s4 1966171168
    %v834 = vunpack.c.0.s8 %v833
    %v835 = vlaneseq
    %v836 = vshrl.u32 %v835, 7
    %v837 = vsub.s32 %v834, %v836
    %v838 = vrot.slane %v831, %v837
    %v839 = vcombine.high %v838, %v838
    %v841 = vunpack.c.l.s4 1966171168
    %v842 = vunpack.c.0.s8 %v841
    %v843 = vlaneseq
    %v844 = vshrl.u32 %v843, 7
    %v845 = vsub.s32 %v842, %v844
    %v846 = vrot.slane %v838, %v845
    %v848 = vunpack.c.l.s4 1966171168
    %v849 = vunpack.c.0.s8 %v848
    %v850 = vlaneseq
    %v851 = vshrl.u32 %v850, 7
    %v852 = vsub.s32 %v849, %v851
    %v853 = vrot.slane %v839, %v852
    %v854 = vlaneseq
    %v855 = vshrl.u32 %v854, 7
    %v856 = vsub.s32 0, %v855
    %v857 = vrot.slane %v846, %v856
    %v858 = vlaneseq
    %v859 = vshrl.u32 %v858, 7
    %v860 = vsub.s32 1, %v859
    %v861 = vrot.slane %v846, %v860
    %v862 = vlaneseq
    %v863 = vshrl.u32 %v862, 7
    %v864 = vsub.s32 0, %v863
    %v865 = vrot.slane %v853, %v864
    %v866 = vlaneseq
    %v867 = vshrl.u32 %v866, 7
    %v868 = vsub.s32 1, %v867
    %v869 = vrot.slane %v853, %v868
    %v874 = vmul.f32 %v436, %v857
    %v875 = vmul.f32 %v437, %v861
    %v876 = vmul.f32 %v438, %v857
    %v877 = vmul.f32 %v439, %v861
    %v878 = vmul.f32 %v440, %v857
    %v879 = vmul.f32 %v441, %v861
    %v880 = vmul.f32 %v442, %v857
    %v881 = vmul.f32 %v443, %v861
    %v882 = vmul.f32 %v444, %v865
    %v883 = vmul.f32 %v445, %v869
    %v884 = vmul.f32 %v446, %v865
    %v885 = vmul.f32 %v447, %v869
    %v886 = vmul.f32 %v448, %v865
    %v887 = vmul.f32 %v449, %v869
    %v888 = vmul.f32 %v450, %v865
    %v889 = vmul.f32 %v451, %v869
    %v890 = vadd.f32 %v50, %v874
    %v891 = vadd.f32 %v51, %v875
    %v892 = vadd.f32 %v52, %v876
    %v893 = vadd.f32 %v53, %v877
    %v894 = vadd.f32 %v54, %v878
    %v895 = vadd.f32 %v55, %v879
    %v896 = vadd.f32 %v56, %v880
    %v897 = vadd.f32 %v57, %v881
    %v898 = vadd.f32 %v58, %v882
    %v899 = vadd.f32 %v59, %v883
    %v900 = vadd.f32 %v60, %v884
    %v901 = vadd.f32 %v61, %v885
    %v902 = vadd.f32 %v62, %v886
    %v903 = vadd.f32 %v63, %v887
    %v904 = vadd.f32 %v64, %v888
    %v905 = vadd.f32 %v65, %v889
    %906 = vst [vmem:[#allocation8] sm:$0xff] %v890
    %907 = vst [vmem:[#allocation8 + $0x8] sm:$0xff] %v891
    %908 = vst [vmem:[#allocation8 + $0x10] sm:$0xff] %v892
    %909 = vst [vmem:[#allocation8 + $0x18] sm:$0xff] %v893
    %910 = vst [vmem:[#allocation8 + $0x20] sm:$0xff] %v894
    %911 = vst [vmem:[#allocation8 + $0x28] sm:$0xff] %v895
    %912 = vst [vmem:[#allocation8 + $0x30] sm:$0xff] %v896
    %913 = vst [vmem:[#allocation8 + $0x38] sm:$0xff] %v897
    %914 = vst [vmem:[#allocation8 + $0x40] sm:$0xff] %v898
    %915 = vst [vmem:[#allocation8 + $0x48] sm:$0xff] %v899
    %916 = vst [vmem:[#allocation8 + $0x50] sm:$0xff] %v900
    %917 = vst [vmem:[#allocation8 + $0x58] sm:$0xff] %v901
    %918 = vst [vmem:[#allocation8 + $0x60] sm:$0xff] %v902
    %919 = vst [vmem:[#allocation8 + $0x68] sm:$0xff] %v903
    %920 = vst [vmem:[#allocation8 + $0x70] sm:$0xff] %v904
    %921 = vst [vmem:[#allocation8 + $0x78] sm:$0xff] %v905
    // Predicated region
    $region30: #{tpu_custom_call.1} parent=1 // pred_check
      _
    $region31: #{tpu_custom_call.1} parent=1 // pred_check_branch
      %923 = sbr.rel (0) target = $region33
    $region32: #{tpu_custom_call.1} parent=1 // pred_region
      %s925 = ssub.s32 2048, 2048
      %926 = vsyncadd [#allocation5], %s925
      %s927 = sshll.u32 [#allocation8], 4
      %s928 = int_to_ptr.vmem [resolvable:$true] %s927
      %933 = dma.vmem_to_hbm [thread:$0]  %s928, 2048, %s5, [#allocation5], 256, 256, 16
    $region33: #{tpu_custom_call.1} parent=1 // pred_fallthru
      _
    // Predicated region
    $region34: #{tpu_custom_call.1} parent=1 // pred_check
      _
    $region35: #{tpu_custom_call.1} parent=1 // pred_check_branch
      %935 = sbr.rel (0) target = $region37
    $region36: #{tpu_custom_call.1} parent=1 // pred_region
      %936 = dma.done [#allocation5], 2048
    $region37: #{tpu_custom_call.1} parent=1 // pred_fallthru
      _
    %937 = vsyncpa [#allocation4], 1
    %938 = vsyncpa [#allocation7], 1
    %939 = vsyncpa [#allocation5], 1

</llo_original>
